<compile_context>
chip_gen: v7x
topology: tpu7x:2x2x1
jax: 0.10.0
libtpu: 0.0.40
codegen_flags: <defaults>
</compile_context>

<pallas_src>
import functools

import jax
import jax.numpy as jnp
from jax.experimental import pallas as pl
from jax.experimental.pallas import tpu as pltpu

# --- Pendulum-v1 constants (env not importable here; values fixed by the env) ---
STATE_NUMBER = 3     # env.observation_space.shape[0]
ACTION_NUMBER = 1    # env.action_space.shape[0]
MAX_ACTION = 2.0     # env.action_space.high[0]
HIDDEN = 100

# Padded tile sizes
S_PAD = 128                 # lanes for input features
H_PAD = 128                 # lanes for hidden
OUT_PAD = 128               # fused heads: lanes [0:A) = mean, [A:2A) = std
ONE_COL = STATE_NUMBER      # constant-1 input column (carries b_in)
ONE_LANE = H_PAD - 1        # zero-padded hidden lane forced to 1.0 (carries head biases)


def _softplus(x):
    # numerically stable softplus == torch.nn.functional.softplus (beta=1)
    return jnp.maximum(x, 0.0) + jnp.log1p(jnp.exp(-jnp.abs(x)))


def actor_kernel(x_ref, w1_ref, wh_ref, out_ref):
    # Layer 1, bias folded into K: x[:, ONE_COL] == 1.0 and w1[ONE_COL, :] == b_in.
    h = jnp.dot(x_ref[...], w1_ref[...], preferred_element_type=jnp.float32)
    h = jnp.maximum(h, 0.0)

    # Force the zero-padded hidden lane to 1.0 so wh[ONE_LANE, :] acts as the head biases.
    lane = jax.lax.broadcasted_iota(jnp.int32, h.shape, 1)
    h = jnp.where(lane == ONE_LANE, 1.0, h)

    # Fused heads: single (B_BLOCK, H_PAD) @ (H_PAD, OUT_PAD) matmul.
    pre = jnp.dot(h, wh_ref[...], preferred_element_type=jnp.float32)

    out_lane = jax.lax.broadcasted_iota(jnp.int32, pre.shape, 1)
    out_ref[...] = jnp.where(out_lane < ACTION_NUMBER,
                             MAX_ACTION * jnp.tanh(pre),
                             _softplus(pre))


def prepare_params(params):
    """Pad / transpose PyTorch-layout parameters ONCE into kernel-ready slabs."""
    w_in, b_in, w_act, b_act, w_std, b_std = params

    # Layer 1: (in, out) layout with the bias in the constant-1 input row.
    w1 = jnp.zeros((S_PAD, H_PAD), jnp.float32)
    w1 = w1.at[:STATE_NUMBER, :HIDDEN].set(w_in.T)
    w1 = w1.at[ONE_COL, :HIDDEN].set(b_in)

    # Fused head slab: mean weights in lanes [0:A), std weights in lanes [A:2A),
    # head biases in the constant-1 hidden row.
    wh = jnp.zeros((H_PAD, OUT_PAD), jnp.float32)
    wh = wh.at[:HIDDEN, 0:ACTION_NUMBER].set(w_act.T)
    wh = wh.at[:HIDDEN, ACTION_NUMBER:2 * ACTION_NUMBER].set(w_std.T)
    wh = wh.at[ONE_LANE, 0:ACTION_NUMBER].set(b_act)
    wh = wh.at[ONE_LANE, ACTION_NUMBER:2 * ACTION_NUMBER].set(b_std)
    return w1, wh


@jax.jit
def actor_net_forward(state, w1_pad, wh_pad):
    """state: (B, STATE_NUMBER) float32. Returns (mean, std), each (B, ACTION_NUMBER)."""
    B = state.shape[0]
    # Small batches: one 8-row tile. Large rollout batches: 256-row tiles split
    # across TensorCores via the parallel grid axis.
    B_BLOCK = 256 if B > 256 else 8
    B_pad = ((B + B_BLOCK - 1) // B_BLOCK) * B_BLOCK

    x = jnp.zeros((B_pad, S_PAD), jnp.float32)
    x = x.at[:B, :STATE_NUMBER].set(state.astype(jnp.float32))
    x = x.at[:, ONE_COL].set(1.0)          # constant-1 column carrying b_in

    out = pl.pallas_call(
        actor_kernel,
        out_shape=jax.ShapeDtypeStruct((B_pad, OUT_PAD), jnp.float32),
        grid=(B_pad // B_BLOCK,),
        in_specs=[
            pl.BlockSpec((B_BLOCK, S_PAD), lambda i: (i, 0)),
            pl.BlockSpec((S_PAD, H_PAD), lambda i: (0, 0)),    # weights stay resident
            pl.BlockSpec((H_PAD, OUT_PAD), lambda i: (0, 0)),  # weights stay resident
        ],
        out_specs=pl.BlockSpec((B_BLOCK, OUT_PAD), lambda i: (i, 0)),
        compiler_params=pltpu.CompilerParams(dimension_semantics=("parallel",)),
    )(x, w1_pad, wh_pad)

    mean = out[:B, 0:ACTION_NUMBER]
    std = out[:B, ACTION_NUMBER:2 * ACTION_NUMBER]
    return mean, std


def init_params(key):
    """Deterministic synthetic init mirroring Actor_net.__init__ shapes.
    Weights ~ N(0, 0.1) (as in the module); biases ~ U(-1/sqrt(fan_in), 1/sqrt(fan_in))
    (PyTorch Linear default, not overridden)."""
    ks = jax.random.split(key, 6)
    w_in = 0.1 * jax.random.normal(ks[0], (HIDDEN, STATE_NUMBER), jnp.float32)
    b_in = jax.random.uniform(ks[1], (HIDDEN,), jnp.float32,
                              -1.0 / jnp.sqrt(STATE_NUMBER), 1.0 / jnp.sqrt(STATE_NUMBER))
    w_act = 0.1 * jax.random.normal(ks[2], (ACTION_NUMBER, HIDDEN), jnp.float32)
    b_act = jax.random.uniform(ks[3], (ACTION_NUMBER,), jnp.float32,
                               -1.0 / jnp.sqrt(HIDDEN), 1.0 / jnp.sqrt(HIDDEN))
    w_std = 0.1 * jax.random.normal(ks[4], (ACTION_NUMBER, HIDDEN), jnp.float32)
    b_std = jax.random.uniform(ks[5], (ACTION_NUMBER,), jnp.float32,
                               -1.0 / jnp.sqrt(HIDDEN), 1.0 / jnp.sqrt(HIDDEN))
    return w_in, b_in, w_act, b_act, w_std, b_std


def reference_forward(state, params):
    w_in, b_in, w_act, b_act, w_std, b_std = params
    h = jnp.maximum(state @ w_in.T + b_in, 0.0)
    mean = MAX_ACTION * jnp.tanh(h @ w_act.T + b_act)
    std = jax.nn.softplus(h @ w_std.T + b_std)
    return mean, std


if __name__ == "__main__":
    key = jax.random.PRNGKey(0)
    pkey, xkey = jax.random.split(key)
    params = init_params(pkey)

    # Pad / transpose the parameters ONCE; reuse the slabs every forward call.
    w1_pad, wh_pad = prepare_params(params)
    w1_pad, wh_pad = jax.block_until_ready((w1_pad, wh_pad))

    B = 2
    state = jax.random.normal(xkey, (B, STATE_NUMBER), jnp.float32)

    mean, std = actor_net_forward(state, w1_pad, wh_pad)
    jax.block_until_ready((mean, std))

    mean_ref, std_ref = reference_forward(state, params)
    assert mean.shape == (B, ACTION_NUMBER) and std.shape == (B, ACTION_NUMBER)
    assert jnp.allclose(mean, mean_ref, atol=1e-5, rtol=1e-5)
    assert jnp.allclose(std, std_ref, atol=1e-5, rtol=1e-5)

    print("KERNEL_OK")
</pallas_src>

<mosaic_0001>
module attributes {stable_mosaic.version = 11 : i64} {
  func.func @actor_kernel(%arg0: i32, %arg1: memref<8x128xf32, #tpu.memory_space<vmem>>, %arg2: memref<128x128xf32, #tpu.memory_space<vmem>>, %arg3: memref<128x128xf32, #tpu.memory_space<vmem>>, %arg4: memref<8x128xf32, #tpu.memory_space<vmem>>) attributes {dimension_semantics = [#tpu.dimension_semantics<parallel>], iteration_bounds = array<i64: 1>, scalar_prefetch = 0 : i64, scratch_operands = 0 : i64, tpu.core_type = #tpu.core_type<tc>, window_params = [{transform_indices = @transform_0, window_bounds = array<i64: 8, 128>}, {pipeline_mode = #tpu.pipeline_mode<synchronous>, transform_indices = @transform_1, window_bounds = array<i64: 128, 128>}, {pipeline_mode = #tpu.pipeline_mode<synchronous>, transform_indices = @transform_2, window_bounds = array<i64: 128, 128>}, {transform_indices = @transform_3, window_bounds = array<i64: 8, 128>}]} {
    %c0 = arith.constant 0 : index
    %c0_0 = arith.constant 0 : index
    %0 = vector.load %arg1[%c0, %c0_0] : memref<8x128xf32, #tpu.memory_space<vmem>>, vector<8x128xf32>
    %c0_1 = arith.constant 0 : index
    %c0_2 = arith.constant 0 : index
    %1 = vector.load %arg2[%c0_1, %c0_2] : memref<128x128xf32, #tpu.memory_space<vmem>>, vector<128x128xf32>
    %cst = arith.constant dense<0.000000e+00> : vector<8x128xf32>
    %2 = tpu.matmul %0, %1, %cst {dimension_numbers = #tpu.dot_dimension_numbers<[1], [0], [0], [1], [0, 0, 1, 1], [], []>} : vector<8x128xf32>, vector<128x128xf32>, vector<8x128xf32> -> vector<8x128xf32>
    %cst_3 = arith.constant 0.000000e+00 : f32
    %3 = vector.broadcast %cst_3 : f32 to vector<8x128xf32>
    %4 = arith.maximumf %2, %3 : vector<8x128xf32>
    %5 = tpu.iota {dimensions = array<i32: 1>} : vector<8x128xi32>
    %c127_i32 = arith.constant 127 : i32
    %6 = vector.broadcast %c127_i32 : i32 to vector<8x128xi32>
    %7 = arith.cmpi eq, %5, %6 : vector<8x128xi32>
    %cst_4 = arith.constant 1.000000e+00 : f32
    %8 = vector.broadcast %cst_4 : f32 to vector<8x128xf32>
    %9 = arith.select %7, %8, %4 : vector<8x128xi1>, vector<8x128xf32>
    %c0_5 = arith.constant 0 : index
    %c0_6 = arith.constant 0 : index
    %10 = vector.load %arg3[%c0_5, %c0_6] : memref<128x128xf32, #tpu.memory_space<vmem>>, vector<128x128xf32>
    %cst_7 = arith.constant dense<0.000000e+00> : vector<8x128xf32>
    %11 = tpu.matmul %9, %10, %cst_7 {dimension_numbers = #tpu.dot_dimension_numbers<[1], [0], [0], [1], [0, 0, 1, 1], [], []>} : vector<8x128xf32>, vector<128x128xf32>, vector<8x128xf32> -> vector<8x128xf32>
    %12 = tpu.iota {dimensions = array<i32: 1>} : vector<8x128xi32>
    %c1_i32 = arith.constant 1 : i32
    %13 = vector.broadcast %c1_i32 : i32 to vector<8x128xi32>
    %14 = arith.cmpi slt, %12, %13 : vector<8x128xi32>
    %15 = math.tanh %11 : vector<8x128xf32>
    %cst_8 = arith.constant 2.000000e+00 : f32
    %16 = vector.broadcast %cst_8 : f32 to vector<8x128xf32>
    %17 = arith.mulf %16, %15 : vector<8x128xf32>
    %cst_9 = arith.constant 0.000000e+00 : f32
    %18 = vector.broadcast %cst_9 : f32 to vector<8x128xf32>
    %19 = arith.maximumf %11, %18 : vector<8x128xf32>
    %20 = math.absf %11 : vector<8x128xf32>
    %cst_10 = arith.constant 0.000000e+00 : f32
    %21 = vector.broadcast %cst_10 : f32 to vector<8x128xf32>
    %22 = arith.subf %21, %20 : vector<8x128xf32>
    %23 = math.exp %22 : vector<8x128xf32>
    %24 = math.log1p %23 : vector<8x128xf32>
    %25 = arith.addf %19, %24 : vector<8x128xf32>
    %26 = arith.select %14, %17, %25 : vector<8x128xi1>, vector<8x128xf32>
    %c0_11 = arith.constant 0 : index
    %c0_12 = arith.constant 0 : index
    %27 = vector.load %arg4[%c0_11, %c0_12] : memref<8x128xf32, #tpu.memory_space<vmem>>, vector<8x128xf32>
    tpu.vector_store %arg4[%c0_11, %c0_12], %26 {strides = array<i32>} : memref<8x128xf32, #tpu.memory_space<vmem>>, vector<8x128xf32>,
    return
  }
  func.func @transform_0(%arg0: i32) -> (i32, i32) {
    %c0_i32 = arith.constant 0 : i32
    %c0_i32_0 = arith.constant 0 : i32
    return %arg0, %c0_i32 : i32, i32
  }
  func.func @transform_1(%arg0: i32) -> (i32, i32) {
    %c0_i32 = arith.constant 0 : i32
    %c0_i32_0 = arith.constant 0 : i32
    %c0_i32_1 = arith.constant 0 : i32
    return %c0_i32, %c0_i32_0 : i32, i32
  }
  func.func @transform_2(%arg0: i32) -> (i32, i32) {
    %c0_i32 = arith.constant 0 : i32
    %c0_i32_0 = arith.constant 0 : i32
    %c0_i32_1 = arith.constant 0 : i32
    return %c0_i32, %c0_i32_0 : i32, i32
  }
  func.func @transform_3(%arg0: i32) -> (i32, i32) {
    %c0_i32 = arith.constant 0 : i32
    %c0_i32_0 = arith.constant 0 : i32
    return %arg0, %c0_i32 : i32, i32
  }
}

</mosaic_0001>

<llo_original>
// kernel: actor_net_forward.1
$region0: #{actor_net_forward.1}
  #allocation0 [shape = 'u32[]', space=smem, size = 0x4, offset = 0x4, fixed_abs, tag = 'smem constant byte address 0x4 - core index']
  #allocation1 [shape = 'u32[144,128]{1,0:T(1,128)}', space=vmem, size = 0x12000, scoped, tag = 'internal scratch']
  %s0 = inlined_call_operand.vmem [shape: f32[8,128], index: 0, kind: input, shape index: {}]
  %s1 = inlined_call_operand.hbm [shape: f32[128,128], index: 1, kind: input, shape index: {}]
  %s2 = inlined_call_operand.hbm [shape: f32[128,128], index: 2, kind: input, shape index: {}]
  %s3 = inlined_call_operand.vmem [shape: f32[8,128], index: 3, kind: output, shape index: {}]
  %s4 = sld [smem:[#allocation0]]
  $region30: #{actor_net_forward.1} parent=0
    _
  %s6 = ssub.s32 1, %s4
  %s7 = scalar_select 0, %s6, %s4
  $region1: #{actor_net_forward.1} parent=0
    #allocation2 [shape = 'u8[65536]{0}', space=vmem, size = 0x10000, scoped, tag = 'input window, operand 1, single buffered']
    #allocation3 [shape = 's32[1]{0}', space=sflag, size = 0x4, scoped, tag = 'scoped memory for actor_net_forward.1']
    #allocation4 [shape = 'u8[65536]{0}', space=vmem, size = 0x10000, scoped, tag = 'input window, operand 2, single buffered']
    #allocation5 [shape = 's32[1]{0}', space=sflag, size = 0x4, scoped, tag = 'scoped memory for actor_net_forward.1']
    %8 = vsyncpa [#allocation3], 0
    %9 = vsyncpa [#allocation5], 0
    // Predicated region
    $region2: #{actor_net_forward.1} parent=1 // pred_check
      _
    $region3: #{actor_net_forward.1} parent=1 // pred_check_branch
      %11 = sbr.rel (0) target = $region5
    $region4: #{actor_net_forward.1} parent=1 // pred_region
      _
    $region5: #{actor_net_forward.1} parent=1 // pred_fallthru
      _
    // Predicated region
    $region6: #{actor_net_forward.1} parent=1 // pred_check
      _
    $region7: #{actor_net_forward.1} parent=1 // pred_check_branch
      %13 = sbr.rel (0) target = $region9
    $region8: #{actor_net_forward.1} parent=1 // pred_region
      %s15 = ssub.s32 2048, 2048
      %16 = vsyncadd [#allocation3], %s15
      %s17 = sshll.u32 [#allocation2], 4
      %s18 = int_to_ptr.vmem [resolvable:$true] %s17
      %23 = dma.hbm_to_vmem [thread:$0]  %s1, 2048, %s18, [#allocation3], 128, 128, 8
    $region9: #{actor_net_forward.1} parent=1 // pred_fallthru
      _
    // Predicated region
    $region10: #{actor_net_forward.1} parent=1 // pred_check
      _
    $region11: #{actor_net_forward.1} parent=1 // pred_check_branch
      %25 = sbr.rel (0) target = $region13
    $region12: #{actor_net_forward.1} parent=1 // pred_region
      %s27 = ssub.s32 2048, 2048
      %28 = vsyncadd [#allocation5], %s27
      %s29 = sshll.u32 [#allocation4], 4
      %s30 = int_to_ptr.vmem [resolvable:$true] %s29
      %35 = dma.hbm_to_vmem [thread:$0]  %s2, 2048, %s30, [#allocation5], 128, 128, 8
    $region13: #{actor_net_forward.1} parent=1 // pred_fallthru
      _
    // Predicated region
    $region14: #{actor_net_forward.1} parent=1 // pred_check
      _
    $region15: #{actor_net_forward.1} parent=1 // pred_check_branch
      %37 = sbr.rel (0) target = $region17
    $region16: #{actor_net_forward.1} parent=1 // pred_region
      %38 = dma.done [#allocation3], 2048
    $region17: #{actor_net_forward.1} parent=1 // pred_fallthru
      _
    // Predicated region
    $region18: #{actor_net_forward.1} parent=1 // pred_check
      _
    $region19: #{actor_net_forward.1} parent=1 // pred_check_branch
      %40 = sbr.rel (0) target = $region21
    $region20: #{actor_net_forward.1} parent=1 // pred_region
      %41 = dma.done [#allocation5], 2048
    $region21: #{actor_net_forward.1} parent=1 // pred_fallthru
      _
    %v42 = vld [vmem:[%s0] sm:$0xff]
    %v43 = vld [vmem:[#allocation2] sm:$0xff]
    %v44 = vld [vmem:[#allocation2 + $0x8] sm:$0xff]
    %v45 = vld [vmem:[#allocation2 + $0x10] sm:$0xff]
    %v46 = vld [vmem:[#allocation2 + $0x18] sm:$0xff]
    %v47 = vld [vmem:[#allocation2 + $0x20] sm:$0xff]
    %v48 = vld [vmem:[#allocation2 + $0x28] sm:$0xff]
    %v49 = vld [vmem:[#allocation2 + $0x30] sm:$0xff]
    %v50 = vld [vmem:[#allocation2 + $0x38] sm:$0xff]
    %v51 = vld [vmem:[#allocation2 + $0x40] sm:$0xff]
    %v52 = vld [vmem:[#allocation2 + $0x48] sm:$0xff]
    %v53 = vld [vmem:[#allocation2 + $0x50] sm:$0xff]
    %v54 = vld [vmem:[#allocation2 + $0x58] sm:$0xff]
    %v55 = vld [vmem:[#allocation2 + $0x60] sm:$0xff]
    %v56 = vld [vmem:[#allocation2 + $0x68] sm:$0xff]
    %v57 = vld [vmem:[#allocation2 + $0x70] sm:$0xff]
    %v58 = vld [vmem:[#allocation2 + $0x78] sm:$0xff]
    %59 = vmatprep.subr.mxu0 0.0
    %60 = vmatpush1.msra.mxu0 %v43
    %61 = vmatprep.subr.mxu0 0.0
    %62 = vmatpush1.msra.mxu0 %v44
    %63 = vmatprep.subr.mxu0 0.0
    %64 = vmatpush1.msra.mxu0 %v45
    %65 = vmatprep.subr.mxu0 0.0
    %66 = vmatpush1.msra.mxu0 %v46
    %67 = vmatprep.subr.mxu0 0.0
    %68 = vmatpush1.msra.mxu0 %v47
    %69 = vmatprep.subr.mxu0 0.0
    %70 = vmatpush1.msra.mxu0 %v48
    %71 = vmatprep.subr.mxu0 0.0
    %72 = vmatpush1.msra.mxu0 %v49
    %73 = vmatprep.subr.mxu0 0.0
    %74 = vmatpush1.msra.mxu0 %v50
    %75 = vmatprep.subr.mxu0 0.0
    %76 = vmatpush1.msra.mxu0 %v51
    %77 = vmatprep.subr.mxu0 0.0
    %78 = vmatpush1.msra.mxu0 %v52
    %79 = vmatprep.subr.mxu0 0.0
    %80 = vmatpush1.msra.mxu0 %v53
    %81 = vmatprep.subr.mxu0 0.0
    %82 = vmatpush1.msra.mxu0 %v54
    %83 = vmatprep.subr.mxu0 0.0
    %84 = vmatpush1.msra.mxu0 %v55
    %85 = vmatprep.subr.mxu0 0.0
    %86 = vmatpush1.msra.mxu0 %v56
    %87 = vmatprep.subr.mxu0 0.0
    %88 = vmatpush1.msra.mxu0 %v57
    %89 = vmatprep.subr.mxu0 0.0
    %90 = vmatpush1.msra.mxu0 %v58
    %91 = vmatprep.subr.mxu0 0.0
    %92 = vmatpush1.msra.mxu0 0.0
    %93 = vmatprep.subr.mxu0 0.0
    %94 = vmatpush1.msra.mxu0 0.0
    %95 = vmatprep.subr.mxu0 0.0
    %96 = vmatpush1.msra.mxu0 0.0
    %97 = vmatprep.subr.mxu0 0.0
    %98 = vmatpush1.msra.mxu0 0.0
    %99 = vmatprep.subr.mxu0 0.0
    %100 = vmatpush1.msra.mxu0 0.0
    %101 = vmatprep.subr.mxu0 0.0
    %102 = vmatpush1.msra.mxu0 0.0
    %103 = vmatprep.subr.mxu0 0.0
    %104 = vmatpush1.msra.mxu0 0.0
    %105 = vmatprep.subr.mxu0 0.0
    %106 = vmatpush1.msra.mxu0 0.0
    %107 = vmatprep.subr.mxu0 0.0
    %108 = vmatpush1.msra.mxu0 0.0
    %109 = vmatprep.subr.mxu0 0.0
    %110 = vmatpush1.msra.mxu0 0.0
    %111 = vmatprep.subr.mxu0 0.0
    %112 = vmatpush1.msra.mxu0 0.0
    %113 = vmatprep.subr.mxu0 0.0
    %114 = vmatpush1.msra.mxu0 0.0
    %115 = vmatprep.subr.mxu0 0.0
    %116 = vmatpush1.msra.mxu0 0.0
    %117 = vmatprep.subr.mxu0 0.0
    %118 = vmatpush1.msra.mxu0 0.0
    %119 = vmatprep.subr.mxu0 0.0
    %120 = vmatpush1.msra.mxu0 0.0
    %121 = vmatprep.subr.mxu0 0.0
    %122 = vmatpush1.msra.mxu0 0.0
    %123 = vmatprep.mubr.f32.mxu0 0.0
    %124 = vmatmul.mubr.f32.gmra.mrb[0].mxu0 %v42
    %v125 = vpop.f32.mrb[0].mxu0
    %v126 = vadd.f32 0.0, %v125
    %v127 = vpop.f32.mrb[0].mxu0
    %128 = vdwg.mxu0
    %v129 = vmax.f32 %v126, 0.0
    %v130 = vlaneseq
    %v131 = vand.u32 %v130, 127
    %vm132 = vcmp.eq.s32.totalorder %v131, 127
    %v133 = vsel %vm132, 1.0, %v129
    %v134 = vld [vmem:[#allocation4] sm:$0xff]
    %v135 = vld [vmem:[#allocation4 + $0x8] sm:$0xff]
    %v136 = vld [vmem:[#allocation4 + $0x10] sm:$0xff]
    %v137 = vld [vmem:[#allocation4 + $0x18] sm:$0xff]
    %v138 = vld [vmem:[#allocation4 + $0x20] sm:$0xff]
    %v139 = vld [vmem:[#allocation4 + $0x28] sm:$0xff]
    %v140 = vld [vmem:[#allocation4 + $0x30] sm:$0xff]
    %v141 = vld [vmem:[#allocation4 + $0x38] sm:$0xff]
    %v142 = vld [vmem:[#allocation4 + $0x40] sm:$0xff]
    %v143 = vld [vmem:[#allocation4 + $0x48] sm:$0xff]
    %v144 = vld [vmem:[#allocation4 + $0x50] sm:$0xff]
    %v145 = vld [vmem:[#allocation4 + $0x58] sm:$0xff]
    %v146 = vld [vmem:[#allocation4 + $0x60] sm:$0xff]
    %v147 = vld [vmem:[#allocation4 + $0x68] sm:$0xff]
    %v148 = vld [vmem:[#allocation4 + $0x70] sm:$0xff]
    %v149 = vld [vmem:[#allocation4 + $0x78] sm:$0xff]
    %150 = vmatprep.subr.mxu0 0.0
    %151 = vmatpush1.msra.mxu0 %v134
    %152 = vmatprep.subr.mxu0 0.0
    %153 = vmatpush1.msra.mxu0 %v135
    %154 = vmatprep.subr.mxu0 0.0
    %155 = vmatpush1.msra.mxu0 %v136
    %156 = vmatprep.subr.mxu0 0.0
    %157 = vmatpush1.msra.mxu0 %v137
    %158 = vmatprep.subr.mxu0 0.0
    %159 = vmatpush1.msra.mxu0 %v138
    %160 = vmatprep.subr.mxu0 0.0
    %161 = vmatpush1.msra.mxu0 %v139
    %162 = vmatprep.subr.mxu0 0.0
    %163 = vmatpush1.msra.mxu0 %v140
    %164 = vmatprep.subr.mxu0 0.0
    %165 = vmatpush1.msra.mxu0 %v141
    %166 = vmatprep.subr.mxu0 0.0
    %167 = vmatpush1.msra.mxu0 %v142
    %168 = vmatprep.subr.mxu0 0.0
    %169 = vmatpush1.msra.mxu0 %v143
    %170 = vmatprep.subr.mxu0 0.0
    %171 = vmatpush1.msra.mxu0 %v144
    %172 = vmatprep.subr.mxu0 0.0
    %173 = vmatpush1.msra.mxu0 %v145
    %174 = vmatprep.subr.mxu0 0.0
    %175 = vmatpush1.msra.mxu0 %v146
    %176 = vmatprep.subr.mxu0 0.0
    %177 = vmatpush1.msra.mxu0 %v147
    %178 = vmatprep.subr.mxu0 0.0
    %179 = vmatpush1.msra.mxu0 %v148
    %180 = vmatprep.subr.mxu0 0.0
    %181 = vmatpush1.msra.mxu0 %v149
    %182 = vmatprep.subr.mxu0 0.0
    %183 = vmatpush1.msra.mxu0 0.0
    %184 = vmatprep.subr.mxu0 0.0
    %185 = vmatpush1.msra.mxu0 0.0
    %186 = vmatprep.subr.mxu0 0.0
    %187 = vmatpush1.msra.mxu0 0.0
    %188 = vmatprep.subr.mxu0 0.0
    %189 = vmatpush1.msra.mxu0 0.0
    %190 = vmatprep.subr.mxu0 0.0
    %191 = vmatpush1.msra.mxu0 0.0
    %192 = vmatprep.subr.mxu0 0.0
    %193 = vmatpush1.msra.mxu0 0.0
    %194 = vmatprep.subr.mxu0 0.0
    %195 = vmatpush1.msra.mxu0 0.0
    %196 = vmatprep.subr.mxu0 0.0
    %197 = vmatpush1.msra.mxu0 0.0
    %198 = vmatprep.subr.mxu0 0.0
    %199 = vmatpush1.msra.mxu0 0.0
    %200 = vmatprep.subr.mxu0 0.0
    %201 = vmatpush1.msra.mxu0 0.0
    %202 = vmatprep.subr.mxu0 0.0
    %203 = vmatpush1.msra.mxu0 0.0
    %204 = vmatprep.subr.mxu0 0.0
    %205 = vmatpush1.msra.mxu0 0.0
    %206 = vmatprep.subr.mxu0 0.0
    %207 = vmatpush1.msra.mxu0 0.0
    %208 = vmatprep.subr.mxu0 0.0
    %209 = vmatpush1.msra.mxu0 0.0
    %210 = vmatprep.subr.mxu0 0.0
    %211 = vmatpush1.msra.mxu0 0.0
    %212 = vmatprep.subr.mxu0 0.0
    %213 = vmatpush1.msra.mxu0 0.0
    %214 = vmatprep.mubr.f32.mxu0 0.0
    %215 = vmatmul.mubr.f32.gmra.mrb[0].mxu0 %v133
    %v216 = vpop.f32.mrb[0].mxu0
    %v217 = vadd.f32 0.0, %v216
    %v218 = vpop.f32.mrb[0].mxu0
    %219 = vdwg.mxu0
    %vm220 = vcmp.lt.s32.totalorder %v131, 1
    %v221 = vtanh.pop %v217
    %v222 = vmul.f32 %v221, 2.0
    %v223 = vmax.f32 %v217, 0.0
    %v224 = vand.u32 2147483647, %v217
    %v225 = vsub.f32 0.0, %v224
    %v226 = vmul.f32 %v225, 1.442695
    %v227 = vpow.pop %v226
    %v228 = vadd.f32 %v227, 1.0
    %v229 = vlog2.pop %v228
    %v230 = vmul.f32 %v229, 0.6931472
    %v231 = vmul.f32 -0.5, %v227
    %v232 = vadd.f32 %v231, 1.0
    %v233 = vmul.f32 %v232, %v227
    %v234 = vand.u32 2147483647, %v227
    %vm235 = vcmp.lt.f32.partialorder %v234, 0.0004427343
    %v236 = vsel %vm235, %v233, %v230
    %v237 = vadd.f32 %v223, %v236
    %v238 = vsel %vm220, %v222, %v237
    %239 = vst [vmem:[%s3] sm:$0xff] %v238
    // Predicated region
    $region22: #{actor_net_forward.1} parent=1 // pred_check
      _
    $region23: #{actor_net_forward.1} parent=1 // pred_check_branch
      %241 = sbr.rel (0) target = $region25
    $region24: #{actor_net_forward.1} parent=1 // pred_region
      _
    $region25: #{actor_net_forward.1} parent=1 // pred_fallthru
      _
    // Predicated region
    $region26: #{actor_net_forward.1} parent=1 // pred_check
      _
    $region27: #{actor_net_forward.1} parent=1 // pred_check_branch
      %243 = sbr.rel (0) target = $region29
    $region28: #{actor_net_forward.1} parent=1 // pred_region
      _
    $region29: #{actor_net_forward.1} parent=1 // pred_fallthru
      _
    %244 = vsyncpa [#allocation3], 1
    %245 = vsyncpa [#allocation5], 1

</llo_original>
